<compile_context>
chip_gen: v7x
topology: tpu7x:2x2x1
jax: 0.10.0
libtpu: 0.0.40
codegen_flags: <defaults>
</compile_context>

<pallas_src>
import functools

import jax
import jax.numpy as jnp
import numpy as np
from jax import lax
from jax.experimental import pallas as pl
from jax.experimental.pallas import tpu as pltpu

HIGHEST = jax.lax.Precision.HIGHEST


def _gamma2_fast(x, gain, inv_gain, sat, sgn_gain):
    """gamma2: (1-s)*softplus(x; beta=gain, thr=20) + s*sigmoid(gain*x).

    Single-exp, overflow-free rewrite sharing e = exp(-|gain*x|) between the
    softplus and sigmoid branches.  All per-hidden parameters must already be
    broadcast to x.shape (hoisted out of the unrolled loop).  Matches the
    PyTorch batch_softplus threshold behaviour (lins > 20 -> sign(gain) * x).
    """
    gx = gain * x
    e = jnp.exp(-jnp.abs(gx))                          # in (0, 1], never overflows
    inv_denom = pl.reciprocal(1.0 + e, approx=True)    # EUP, off the VPU path
    sig = jnp.where(gx >= 0.0, inv_denom, e * inv_denom)          # sigmoid(gx)
    sp = (jnp.maximum(gx, 0.0) + jnp.log(1.0 + e)) * inv_gain     # softplus(gx)/gain
    sp = jnp.where(gx > 20.0, sgn_gain * x, sp)                   # PyTorch threshold
    return sp + sat * (sig - sp)                       # == (1-sat)*sp + sat*sig


def _gamma2_ref(x, gain, sat):
    """Literal transcription of the PyTorch Gamma2 / batch_softplus forward."""
    lins = x * gain
    sp = jnp.log(1.0 + jnp.exp(gain * x)) / gain
    sp = jnp.where(lins > 20.0, jnp.sign(gain) * x, sp)
    sig = 1.0 / (1.0 + jnp.exp(-gain * x))
    return (1.0 - sat) * sp + sat * sig


# Row layout of the packed per-hidden parameter matrix (8, H).
_ROW_H0, _ROW_B, _ROW_GAIN, _ROW_INV_GAIN, _ROW_SAT, _ROW_SGN = range(6)


def _rnn_kernel(drive_ref, J_ref, par_ref, h_out_ref, h_sc, r_sc,
                *, one_minus_alpha, chunk, unroll):
    tc = pl.program_id(1)                   # time-chunk index (serial axis)
    Bb, H = h_sc.shape

    # Per-hidden params: load + broadcast to (Bb, H) ONCE per chunk, outside
    # the unrolled fori_loop (JAX does not CSE broadcast_in_dim).
    def row(r):
        return jnp.broadcast_to(par_ref[r:r + 1, :], (Bb, H))

    b = row(_ROW_B)
    gain = row(_ROW_GAIN)
    inv_gain = row(_ROW_INV_GAIN)
    sat = row(_ROW_SAT)
    sgn = row(_ROW_SGN)

    @pl.when(tc == 0)
    def _():
        # PyTorch forward starts from h0 (broadcast over batch), r = gamma2(h0).
        h0 = row(_ROW_H0)
        h_sc[...] = h0
        r_sc[...] = _gamma2_fast(h0, gain, inv_gain, sat, sgn)

    J = J_ref[...]                          # (H, H) bf16 = alpha * n @ m.T / H

    def step(i, carry):
        h, r = carry
        # Single-pass bf16 MXU matmul, f32 accumulation (serial critical path).
        rec = jnp.dot(r.astype(jnp.bfloat16), J, preferred_element_type=jnp.float32)
        h = one_minus_alpha * h + rec + drive_ref[i]
        h_out_ref[i] = h                    # lane-dense (H-wide) store; tanh + wo GEMM in wrapper
        r = _gamma2_fast(h + b, gain, inv_gain, sat, sgn)
        return h, r

    h, r = lax.fori_loop(0, chunk, step, (h_sc[...], r_sc[...]), unroll=unroll)
    h_sc[...] = h
    r_sc[...] = r


def _vmem_limit_bytes():
    """Scoped-VMEM limit derived from the chip (128 MiB v5e/v6e, 64 MiB v7x)."""
    cap = None
    try:
        cap = int(pltpu.get_tpu_info().vmem_capacity_bytes)
    except Exception:
        cap = None
    if not cap:
        cap = 64 * 1024 * 1024              # conservative (v7x-sized) fallback
    return int(min((cap * 3) // 4, 100 * 1024 * 1024))


def _num_tensorcores():
    """Best-effort TensorCore count (2 on v7x, 1 on v5e/v6e); safe fallback 1."""
    try:
        info = pltpu.get_tpu_info()
        for attr in ("num_cores", "core_count", "num_tensorcores", "tensorcore_count"):
            v = getattr(info, attr, None)
            if v:
                return int(v)
    except Exception:
        pass
    return 1


def low_rank_rnn_forward(x, noise, params, *, noise_std, alpha,
                         time_chunk=None, batch_block=None):
    """x: (batch, seq, input), noise: (batch, seq, hidden). Returns (batch, seq, output)."""
    B, T, I = x.shape
    H, R = params["m"].shape
    O = params["wo"].shape[1]
    vmem_limit = _vmem_limit_bytes()

    # Split the "parallel" batch grid axis across TensorCores when possible
    # (v7x megacore); no-op on single-TC v5e/v6e or when B is too small.
    if batch_block is None:
        cores = _num_tensorcores()
        batch_block = B
        if cores > 1 and B % (8 * cores) == 0:
            batch_block = B // cores
    if B % batch_block != 0 or not (batch_block == B or batch_block % 8 == 0):
        raise ValueError("batch_block must divide B and be B or a multiple of 8")

    if time_chunk is None:
        # Per-unit-of-Tc VMEM: double-buffered drive input + double-buffered h output.
        per_tc = 2 * 2 * batch_block * H * 4
        fixed = H * H * 2 + 8 * H * 4 + 2 * batch_block * H * 4 + (4 << 20)
        cap = max(1, (vmem_limit - fixed) // per_tc)
        cap = int(min(cap, 256, T))
        time_chunk = max(d for d in range(1, cap + 1) if T % d == 0)
    if T % time_chunk != 0:
        raise ValueError("T must be divisible by time_chunk")

    # One-time parameter preprocessing (scalar folding, rank-1 collapse).
    # alpha folded into the input weights and into J; /H and so folded into wo.
    wi_alpha = alpha * params["wi"] * params["si"][:, None]               # (I, H)
    wo_scaled = (params["wo"] * params["so"][None, :]) / H                # (H, O)
    J = (alpha / H) * jnp.dot(params["n"], params["m"].T, precision=HIGHEST)
    J_bf16 = J.astype(jnp.bfloat16)                                       # (H, H)
    # TODO(synk): for very large H with tiny B (v7x, 64 MiB VMEM) keep the
    # rank-R (n, m) factorization / tile the J matmul instead of materializing
    # the dense bf16 H x H J.

    # Hoisted + fused per-step drive: one (T, B, H) slab, one batched matmul.
    x_seq = jnp.transpose(x, (1, 0, 2))                                   # (T, B, I)
    noise_seq = jnp.transpose(noise, (1, 0, 2))                           # (T, B, H)
    drive = (jnp.einsum("tbi,ih->tbh", x_seq, wi_alpha)
             + noise_std * noise_seq).astype(jnp.float32)                 # (T, B, H)

    gain = params["gain"]
    par = jnp.zeros((8, H), jnp.float32)
    par = par.at[_ROW_H0].set(params["h0"])
    par = par.at[_ROW_B].set(params["b"])
    par = par.at[_ROW_GAIN].set(gain)
    par = par.at[_ROW_INV_GAIN].set(1.0 / gain)
    par = par.at[_ROW_SAT].set(params["sat"])
    par = par.at[_ROW_SGN].set(jnp.sign(gain))

    n_bb = B // batch_block
    n_tc = T // time_chunk
    # Keep carried (h, r) + gamma2 temporaries inside the 64-vreg file.
    unroll = min(time_chunk, 8 if batch_block * H <= 16384 else 4)

    kernel = functools.partial(_rnn_kernel, one_minus_alpha=float(1.0 - alpha),
                               chunk=time_chunk, unroll=unroll)

    h_seq = pl.pallas_call(
        kernel,
        out_shape=jax.ShapeDtypeStruct((T, B, H), jnp.float32),
        grid_spec=pltpu.PrefetchScalarGridSpec(
            num_scalar_prefetch=0,
            grid=(n_bb, n_tc),     # (batch blocks: parallel, time chunks: serial)
            in_specs=[
                pl.BlockSpec((time_chunk, batch_block, H),
                             lambda bb, tc: (tc, bb, 0)),          # fused drive chunk
                pl.BlockSpec((H, H), lambda bb, tc: (0, 0)),       # J (bf16, alpha/H folded)
                pl.BlockSpec((8, H), lambda bb, tc: (0, 0)),       # packed per-hidden params
            ],
            out_specs=pl.BlockSpec((time_chunk, batch_block, H),
                                   lambda bb, tc: (tc, bb, 0)),    # lane-dense h slab
            scratch_shapes=[pltpu.VMEM((batch_block, H), jnp.float32),   # h state
                            pltpu.VMEM((batch_block, H), jnp.float32)],  # r state
        ),
        compiler_params=pltpu.CompilerParams(
            dimension_semantics=("parallel", "arbitrary"),
            vmem_limit_bytes=vmem_limit),
    )(drive, J_bf16, par)

    # Output projection hoisted off the serial loop: one fused full-MXU GEMM.
    out_seq = jnp.einsum("tbh,ho->tbo", jnp.tanh(h_seq), wo_scaled)       # (T, B, O)
    return jnp.transpose(out_seq, (1, 0, 2))


def reference_forward(x, noise, params, *, noise_std, alpha):
    """Pure-JAX reference matching the PyTorch forward loop (f32, HIGHEST)."""
    B, T, I = x.shape
    H = params["m"].shape[0]
    wi_full = params["wi"] * params["si"][:, None]
    wo_full = params["wo"] * params["so"][None, :]
    gain = params["gain"][None, :]
    sat = params["sat"][None, :]

    h = jnp.broadcast_to(params["h0"][None, :], (B, H))
    r = jnp.broadcast_to(_gamma2_ref(params["h0"][None, :], gain, sat), (B, H))
    outs = []
    for i in range(T):
        rec = jnp.dot(jnp.dot(r, params["n"], precision=HIGHEST),
                      params["m"].T, precision=HIGHEST) / H
        inp = jnp.dot(x[:, i, :], wi_full, precision=HIGHEST)
        h = h + noise_std * noise[:, i, :] + alpha * (-h + rec + inp)
        r = _gamma2_ref(h + params["b"][None, :], gain, sat)
        outs.append(jnp.dot(jnp.tanh(h), wo_full, precision=HIGHEST) / H)
    return jnp.stack(outs, axis=1)


def init_params(key, input_size, hidden_size, output_size, rank):
    """Deterministic parameter init mirroring myLowRankRNN.__init__ defaults."""
    ks = jax.random.split(key, 6)
    return {
        "wi": jax.random.normal(ks[0], (input_size, hidden_size), jnp.float32),
        "si": jnp.ones((input_size,), jnp.float32),
        "m": jax.random.normal(ks[1], (hidden_size, rank), jnp.float32),
        "n": jax.random.normal(ks[2], (hidden_size, rank), jnp.float32),
        "b": jnp.zeros((hidden_size,), jnp.float32),
        "wo": 4.0 * jax.random.normal(ks[3], (hidden_size, output_size), jnp.float32),
        "so": jnp.ones((output_size,), jnp.float32),
        "h0": jnp.zeros((hidden_size,), jnp.float32),
        "gain": 10.0 * jax.random.uniform(ks[4], (hidden_size,), jnp.float32),
        "sat": jax.random.uniform(ks[5], (hidden_size,), jnp.float32),
    }


if __name__ == "__main__":
    batch, seq_len = 2, 8
    input_size, hidden_size, output_size, rank = 4, 32, 2, 1
    noise_std, alpha = 0.05, 0.2

    key = jax.random.PRNGKey(0)
    kp, kx, kn = jax.random.split(key, 3)
    params = init_params(kp, input_size, hidden_size, output_size, rank)

    x = jax.random.normal(kx, (batch, seq_len, input_size), jnp.float32)
    # TODO(synk): PyTorch draws noise with torch.randn inside forward(); here it
    # is drawn deterministically in the wrapper and passed in (in-kernel
    # pltpu.prng_* generation would change RNG reproducibility semantics).
    noise = jax.random.normal(kn, (batch, seq_len, hidden_size), jnp.float32)

    # time_chunk=4 -> grid=(1, 2): exercises both the in-kernel fori_loop and
    # the h/r state carry across grid steps.
    out = low_rank_rnn_forward(x, noise, params, noise_std=noise_std,
                               alpha=alpha, time_chunk=4)
    out = jax.block_until_ready(out)

    ref = reference_forward(x, noise, params, noise_std=noise_std, alpha=alpha)
    # bf16 MXU passes + approx reciprocal in the kernel vs. the f32/HIGHEST
    # reference: allow a slightly looser tolerance than pure-f32.
    np.testing.assert_allclose(np.asarray(out), np.asarray(ref), atol=2e-2, rtol=2e-2)

    print("KERNEL_OK")
</pallas_src>

<mosaic_0001>
module attributes {stable_mosaic.version = 11 : i64} {
  func.func @_rnn_kernel(%arg0: i32, %arg1: i32, %arg2: memref<4x2x32xf32, #tpu.memory_space<vmem>>, %arg3: memref<32x32xbf16, #tpu.memory_space<vmem>>, %arg4: memref<8x32xf32, #tpu.memory_space<vmem>>, %arg5: memref<4x2x32xf32, #tpu.memory_space<vmem>>, %arg6: memref<2x32xf32, #tpu.memory_space<vmem>>, %arg7: memref<2x32xf32, #tpu.memory_space<vmem>>) attributes {dimension_semantics = [#tpu.dimension_semantics<parallel>, #tpu.dimension_semantics<arbitrary>], iteration_bounds = array<i64: 1, 2>, scalar_prefetch = 0 : i64, scratch_operands = 2 : i64, tpu.core_type = #tpu.core_type<tc>, window_params = [{transform_indices = @transform_0, window_bounds = array<i64: 4, 2, 32>}, {pipeline_mode = #tpu.pipeline_mode<synchronous>, transform_indices = @transform_1, window_bounds = array<i64: 32, 32>}, {pipeline_mode = #tpu.pipeline_mode<synchronous>, transform_indices = @transform_2, window_bounds = array<i64: 8, 32>}, {transform_indices = @transform_3, window_bounds = array<i64: 4, 2, 32>}]} {
    %c1 = arith.constant 1 : index
    %c0 = arith.constant 0 : index
    %0 = vector.load %arg4[%c1, %c0] : memref<8x32xf32, #tpu.memory_space<vmem>>, vector<1x32xf32>
    %1 = vector.shape_cast %0 : vector<1x32xf32> to vector<1x32xf32>
    %2 = vector.broadcast %1 : vector<1x32xf32> to vector<2x32xf32>
    %c2 = arith.constant 2 : index
    %c0_0 = arith.constant 0 : index
    %3 = vector.load %arg4[%c2, %c0_0] : memref<8x32xf32, #tpu.memory_space<vmem>>, vector<1x32xf32>
    %4 = vector.shape_cast %3 : vector<1x32xf32> to vector<1x32xf32>
    %5 = vector.broadcast %4 : vector<1x32xf32> to vector<2x32xf32>
    %c3 = arith.constant 3 : index
    %c0_1 = arith.constant 0 : index
    %6 = vector.load %arg4[%c3, %c0_1] : memref<8x32xf32, #tpu.memory_space<vmem>>, vector<1x32xf32>
    %7 = vector.shape_cast %6 : vector<1x32xf32> to vector<1x32xf32>
    %8 = vector.broadcast %7 : vector<1x32xf32> to vector<2x32xf32>
    %c4 = arith.constant 4 : index
    %c0_2 = arith.constant 0 : index
    %9 = vector.load %arg4[%c4, %c0_2] : memref<8x32xf32, #tpu.memory_space<vmem>>, vector<1x32xf32>
    %10 = vector.shape_cast %9 : vector<1x32xf32> to vector<1x32xf32>
    %11 = vector.broadcast %10 : vector<1x32xf32> to vector<2x32xf32>
    %c5 = arith.constant 5 : index
    %c0_3 = arith.constant 0 : index
    %12 = vector.load %arg4[%c5, %c0_3] : memref<8x32xf32, #tpu.memory_space<vmem>>, vector<1x32xf32>
    %13 = vector.shape_cast %12 : vector<1x32xf32> to vector<1x32xf32>
    %14 = vector.broadcast %13 : vector<1x32xf32> to vector<2x32xf32>
    %c0_i32 = arith.constant 0 : i32
    %15 = arith.cmpi eq, %arg1, %c0_i32 : i32
    %16 = arith.extui %15 : i1 to i32
    %c0_i32_4 = arith.constant 0 : i32
    %17 = arith.cmpi ne, %16, %c0_i32_4 : i32
    scf.if %17 {
      %c0_63 = arith.constant 0 : index
      %c0_64 = arith.constant 0 : index
      %183 = vector.load %arg4[%c0_63, %c0_64] : memref<8x32xf32, #tpu.memory_space<vmem>>, vector<1x32xf32>
      %184 = vector.shape_cast %183 : vector<1x32xf32> to vector<1x32xf32>
      %185 = vector.broadcast %184 : vector<1x32xf32> to vector<2x32xf32>
      %c0_65 = arith.constant 0 : index
      %c0_66 = arith.constant 0 : index
      %186 = vector.load %arg6[%c0_65, %c0_66] : memref<2x32xf32, #tpu.memory_space<vmem>>, vector<2x32xf32>
      tpu.vector_store %arg6[%c0_65, %c0_66], %185 {strides = array<i32>} : memref<2x32xf32, #tpu.memory_space<vmem>>, vector<2x32xf32>,
      %187 = arith.mulf %5, %185 : vector<2x32xf32>
      %188 = math.absf %187 : vector<2x32xf32>
      %cst_67 = arith.constant 0.000000e+00 : f32
      %189 = vector.broadcast %cst_67 : f32 to vector<2x32xf32>
      %190 = arith.subf %189, %188 : vector<2x32xf32>
      %191 = math.exp %190 : vector<2x32xf32>
      %cst_68 = arith.constant 1.000000e+00 : f32
      %192 = vector.broadcast %cst_68 : f32 to vector<2x32xf32>
      %193 = arith.addf %192, %191 : vector<2x32xf32>
      %194 = tpu.reciprocal %193 {approx = true} : vector<2x32xf32> -> vector<2x32xf32>
      %cst_69 = arith.constant 0.000000e+00 : f32
      %195 = vector.broadcast %cst_69 : f32 to vector<2x32xf32>
      %196 = arith.cmpf oge, %187, %195 : vector<2x32xf32>
      %197 = arith.mulf %191, %194 : vector<2x32xf32>
      %198 = arith.select %196, %194, %197 : vector<2x32xi1>, vector<2x32xf32>
      %cst_70 = arith.constant 0.000000e+00 : f32
      %199 = vector.broadcast %cst_70 : f32 to vector<2x32xf32>
      %200 = arith.maximumf %187, %199 : vector<2x32xf32>
      %cst_71 = arith.constant 1.000000e+00 : f32
      %201 = vector.broadcast %cst_71 : f32 to vector<2x32xf32>
      %202 = arith.addf %201, %191 : vector<2x32xf32>
      %203 = math.log %202 : vector<2x32xf32>
      %204 = arith.addf %200, %203 : vector<2x32xf32>
      %205 = arith.mulf %204, %8 : vector<2x32xf32>
      %cst_72 = arith.constant 2.000000e+01 : f32
      %206 = vector.broadcast %cst_72 : f32 to vector<2x32xf32>
      %207 = arith.cmpf ogt, %187, %206 : vector<2x32xf32>
      %208 = arith.mulf %14, %185 : vector<2x32xf32>
      %209 = arith.select %207, %208, %205 : vector<2x32xi1>, vector<2x32xf32>
      %210 = arith.subf %198, %209 : vector<2x32xf32>
      %211 = arith.mulf %11, %210 : vector<2x32xf32>
      %212 = arith.addf %209, %211 : vector<2x32xf32>
      %c0_73 = arith.constant 0 : index
      %c0_74 = arith.constant 0 : index
      %213 = vector.load %arg7[%c0_73, %c0_74] : memref<2x32xf32, #tpu.memory_space<vmem>>, vector<2x32xf32>
      tpu.vector_store %arg7[%c0_73, %c0_74], %212 {strides = array<i32>} : memref<2x32xf32, #tpu.memory_space<vmem>>, vector<2x32xf32>,
    } else {
    }
    %c0_5 = arith.constant 0 : index
    %c0_6 = arith.constant 0 : index
    %18 = vector.load %arg3[%c0_5, %c0_6] : memref<32x32xbf16, #tpu.memory_space<vmem>>, vector<32x32xbf16>
    %c0_7 = arith.constant 0 : index
    %c0_8 = arith.constant 0 : index
    %19 = vector.load %arg6[%c0_7, %c0_8] : memref<2x32xf32, #tpu.memory_space<vmem>>, vector<2x32xf32>
    %c0_9 = arith.constant 0 : index
    %c0_10 = arith.constant 0 : index
    %20 = vector.load %arg7[%c0_9, %c0_10] : memref<2x32xf32, #tpu.memory_space<vmem>>, vector<2x32xf32>
    %c0_i32_11 = arith.constant 0 : i32
    %21 = arith.truncf %20 : vector<2x32xf32> to vector<2x32xbf16>
    %cst = arith.constant dense<0.000000e+00> : vector<2x32xf32>
    %22 = tpu.matmul %21, %18, %cst {dimension_numbers = #tpu.dot_dimension_numbers<[1], [0], [0], [1], [0, 0, 1, 1], [], []>} : vector<2x32xbf16>, vector<32x32xbf16>, vector<2x32xf32> -> vector<2x32xf32>
    %cst_12 = arith.constant 8.000000e-01 : f32
    %23 = vector.broadcast %cst_12 : f32 to vector<2x32xf32>
    %24 = arith.mulf %23, %19 : vector<2x32xf32>
    %25 = arith.addf %24, %22 : vector<2x32xf32>
    %26 = arith.index_cast %c0_i32_11 : i32 to index
    %c0_13 = arith.constant 0 : index
    %c0_14 = arith.constant 0 : index
    %27 = vector.load %arg2[%26, %c0_13, %c0_14] : memref<4x2x32xf32, #tpu.memory_space<vmem>>, vector<1x2x32xf32>
    %28 = vector.shape_cast %27 : vector<1x2x32xf32> to vector<2x32xf32>
    %29 = arith.addf %25, %28 : vector<2x32xf32>
    %30 = arith.index_cast %c0_i32_11 : i32 to index
    %c0_15 = arith.constant 0 : index
    %c0_16 = arith.constant 0 : index
    %31 = vector.load %arg5[%30, %c0_15, %c0_16] : memref<4x2x32xf32, #tpu.memory_space<vmem>>, vector<1x2x32xf32>
    %32 = vector.shape_cast %31 : vector<1x2x32xf32> to vector<2x32xf32>
    %33 = vector.shape_cast %29 : vector<2x32xf32> to vector<1x2x32xf32>
    tpu.vector_store %arg5[%30, %c0_15, %c0_16], %33 {strides = array<i32>} : memref<4x2x32xf32, #tpu.memory_space<vmem>>, vector<1x2x32xf32>,
    %34 = arith.addf %29, %2 : vector<2x32xf32>
    %35 = arith.mulf %5, %34 : vector<2x32xf32>
    %36 = math.absf %35 : vector<2x32xf32>
    %cst_17 = arith.constant 0.000000e+00 : f32
    %37 = vector.broadcast %cst_17 : f32 to vector<2x32xf32>
    %38 = arith.subf %37, %36 : vector<2x32xf32>
    %39 = math.exp %38 : vector<2x32xf32>
    %cst_18 = arith.constant 1.000000e+00 : f32
    %40 = vector.broadcast %cst_18 : f32 to vector<2x32xf32>
    %41 = arith.addf %40, %39 : vector<2x32xf32>
    %42 = tpu.reciprocal %41 {approx = true} : vector<2x32xf32> -> vector<2x32xf32>
    %cst_19 = arith.constant 0.000000e+00 : f32
    %43 = vector.broadcast %cst_19 : f32 to vector<2x32xf32>
    %44 = arith.cmpf oge, %35, %43 : vector<2x32xf32>
    %45 = arith.mulf %39, %42 : vector<2x32xf32>
    %46 = arith.select %44, %42, %45 : vector<2x32xi1>, vector<2x32xf32>
    %cst_20 = arith.constant 0.000000e+00 : f32
    %47 = vector.broadcast %cst_20 : f32 to vector<2x32xf32>
    %48 = arith.maximumf %35, %47 : vector<2x32xf32>
    %cst_21 = arith.constant 1.000000e+00 : f32
    %49 = vector.broadcast %cst_21 : f32 to vector<2x32xf32>
    %50 = arith.addf %49, %39 : vector<2x32xf32>
    %51 = math.log %50 : vector<2x32xf32>
    %52 = arith.addf %48, %51 : vector<2x32xf32>
    %53 = arith.mulf %52, %8 : vector<2x32xf32>
    %cst_22 = arith.constant 2.000000e+01 : f32
    %54 = vector.broadcast %cst_22 : f32 to vector<2x32xf32>
    %55 = arith.cmpf ogt, %35, %54 : vector<2x32xf32>
    %56 = arith.mulf %14, %34 : vector<2x32xf32>
    %57 = arith.select %55, %56, %53 : vector<2x32xi1>, vector<2x32xf32>
    %58 = arith.subf %46, %57 : vector<2x32xf32>
    %59 = arith.mulf %11, %58 : vector<2x32xf32>
    %60 = arith.addf %57, %59 : vector<2x32xf32>
    %c1_i32 = arith.constant 1 : i32
    %61 = arith.truncf %60 : vector<2x32xf32> to vector<2x32xbf16>
    %cst_23 = arith.constant dense<0.000000e+00> : vector<2x32xf32>
    %62 = tpu.matmul %61, %18, %cst_23 {dimension_numbers = #tpu.dot_dimension_numbers<[1], [0], [0], [1], [0, 0, 1, 1], [], []>} : vector<2x32xbf16>, vector<32x32xbf16>, vector<2x32xf32> -> vector<2x32xf32>
    %cst_24 = arith.constant 8.000000e-01 : f32
    %63 = vector.broadcast %cst_24 : f32 to vector<2x32xf32>
    %64 = arith.mulf %63, %29 : vector<2x32xf32>
    %65 = arith.addf %64, %62 : vector<2x32xf32>
    %66 = arith.index_cast %c1_i32 : i32 to index
    %c0_25 = arith.constant 0 : index
    %c0_26 = arith.constant 0 : index
    %67 = vector.load %arg2[%66, %c0_25, %c0_26] : memref<4x2x32xf32, #tpu.memory_space<vmem>>, vector<1x2x32xf32>
    %68 = vector.shape_cast %67 : vector<1x2x32xf32> to vector<2x32xf32>
    %69 = arith.addf %65, %68 : vector<2x32xf32>
    %70 = arith.index_cast %c1_i32 : i32 to index
    %c0_27 = arith.constant 0 : index
    %c0_28 = arith.constant 0 : index
    %71 = vector.load %arg5[%70, %c0_27, %c0_28] : memref<4x2x32xf32, #tpu.memory_space<vmem>>, vector<1x2x32xf32>
    %72 = vector.shape_cast %71 : vector<1x2x32xf32> to vector<2x32xf32>
    %73 = vector.shape_cast %69 : vector<2x32xf32> to vector<1x2x32xf32>
    tpu.vector_store %arg5[%70, %c0_27, %c0_28], %73 {strides = array<i32>} : memref<4x2x32xf32, #tpu.memory_space<vmem>>, vector<1x2x32xf32>,
    %74 = arith.addf %69, %2 : vector<2x32xf32>
    %75 = arith.mulf %5, %74 : vector<2x32xf32>
    %76 = math.absf %75 : vector<2x32xf32>
    %cst_29 = arith.constant 0.000000e+00 : f32
    %77 = vector.broadcast %cst_29 : f32 to vector<2x32xf32>
    %78 = arith.subf %77, %76 : vector<2x32xf32>
    %79 = math.exp %78 : vector<2x32xf32>
    %cst_30 = arith.constant 1.000000e+00 : f32
    %80 = vector.broadcast %cst_30 : f32 to vector<2x32xf32>
    %81 = arith.addf %80, %79 : vector<2x32xf32>
    %82 = tpu.reciprocal %81 {approx = true} : vector<2x32xf32> -> vector<2x32xf32>
    %cst_31 = arith.constant 0.000000e+00 : f32
    %83 = vector.broadcast %cst_31 : f32 to vector<2x32xf32>
    %84 = arith.cmpf oge, %75, %83 : vector<2x32xf32>
    %85 = arith.mulf %79, %82 : vector<2x32xf32>
    %86 = arith.select %84, %82, %85 : vector<2x32xi1>, vector<2x32xf32>
    %cst_32 = arith.constant 0.000000e+00 : f32
    %87 = vector.broadcast %cst_32 : f32 to vector<2x32xf32>
    %88 = arith.maximumf %75, %87 : vector<2x32xf32>
    %cst_33 = arith.constant 1.000000e+00 : f32
    %89 = vector.broadcast %cst_33 : f32 to vector<2x32xf32>
    %90 = arith.addf %89, %79 : vector<2x32xf32>
    %91 = math.log %90 : vector<2x32xf32>
    %92 = arith.addf %88, %91 : vector<2x32xf32>
    %93 = arith.mulf %92, %8 : vector<2x32xf32>
    %cst_34 = arith.constant 2.000000e+01 : f32
    %94 = vector.broadcast %cst_34 : f32 to vector<2x32xf32>
    %95 = arith.cmpf ogt, %75, %94 : vector<2x32xf32>
    %96 = arith.mulf %14, %74 : vector<2x32xf32>
    %97 = arith.select %95, %96, %93 : vector<2x32xi1>, vector<2x32xf32>
    %98 = arith.subf %86, %97 : vector<2x32xf32>
    %99 = arith.mulf %11, %98 : vector<2x32xf32>
    %100 = arith.addf %97, %99 : vector<2x32xf32>
    %c2_i32 = arith.constant 2 : i32
    %101 = arith.truncf %100 : vector<2x32xf32> to vector<2x32xbf16>
    %cst_35 = arith.constant dense<0.000000e+00> : vector<2x32xf32>
    %102 = tpu.matmul %101, %18, %cst_35 {dimension_numbers = #tpu.dot_dimension_numbers<[1], [0], [0], [1], [0, 0, 1, 1], [], []>} : vector<2x32xbf16>, vector<32x32xbf16>, vector<2x32xf32> -> vector<2x32xf32>
    %cst_36 = arith.constant 8.000000e-01 : f32
    %103 = vector.broadcast %cst_36 : f32 to vector<2x32xf32>
    %104 = arith.mulf %103, %69 : vector<2x32xf32>
    %105 = arith.addf %104, %102 : vector<2x32xf32>
    %106 = arith.index_cast %c2_i32 : i32 to index
    %c0_37 = arith.constant 0 : index
    %c0_38 = arith.constant 0 : index
    %107 = vector.load %arg2[%106, %c0_37, %c0_38] : memref<4x2x32xf32, #tpu.memory_space<vmem>>, vector<1x2x32xf32>
    %108 = vector.shape_cast %107 : vector<1x2x32xf32> to vector<2x32xf32>
    %109 = arith.addf %105, %108 : vector<2x32xf32>
    %110 = arith.index_cast %c2_i32 : i32 to index
    %c0_39 = arith.constant 0 : index
    %c0_40 = arith.constant 0 : index
    %111 = vector.load %arg5[%110, %c0_39, %c0_40] : memref<4x2x32xf32, #tpu.memory_space<vmem>>, vector<1x2x32xf32>
    %112 = vector.shape_cast %111 : vector<1x2x32xf32> to vector<2x32xf32>
    %113 = vector.shape_cast %109 : vector<2x32xf32> to vector<1x2x32xf32>
    tpu.vector_store %arg5[%110, %c0_39, %c0_40], %113 {strides = array<i32>} : memref<4x2x32xf32, #tpu.memory_space<vmem>>, vector<1x2x32xf32>,
    %114 = arith.addf %109, %2 : vector<2x32xf32>
    %115 = arith.mulf %5, %114 : vector<2x32xf32>
    %116 = math.absf %115 : vector<2x32xf32>
    %cst_41 = arith.constant 0.000000e+00 : f32
    %117 = vector.broadcast %cst_41 : f32 to vector<2x32xf32>
    %118 = arith.subf %117, %116 : vector<2x32xf32>
    %119 = math.exp %118 : vector<2x32xf32>
    %cst_42 = arith.constant 1.000000e+00 : f32
    %120 = vector.broadcast %cst_42 : f32 to vector<2x32xf32>
    %121 = arith.addf %120, %119 : vector<2x32xf32>
    %122 = tpu.reciprocal %121 {approx = true} : vector<2x32xf32> -> vector<2x32xf32>
    %cst_43 = arith.constant 0.000000e+00 : f32
    %123 = vector.broadcast %cst_43 : f32 to vector<2x32xf32>
    %124 = arith.cmpf oge, %115, %123 : vector<2x32xf32>
    %125 = arith.mulf %119, %122 : vector<2x32xf32>
    %126 = arith.select %124, %122, %125 : vector<2x32xi1>, vector<2x32xf32>
    %cst_44 = arith.constant 0.000000e+00 : f32
    %127 = vector.broadcast %cst_44 : f32 to vector<2x32xf32>
    %128 = arith.maximumf %115, %127 : vector<2x32xf32>
    %cst_45 = arith.constant 1.000000e+00 : f32
    %129 = vector.broadcast %cst_45 : f32 to vector<2x32xf32>
    %130 = arith.addf %129, %119 : vector<2x32xf32>
    %131 = math.log %130 : vector<2x32xf32>
    %132 = arith.addf %128, %131 : vector<2x32xf32>
    %133 = arith.mulf %132, %8 : vector<2x32xf32>
    %cst_46 = arith.constant 2.000000e+01 : f32
    %134 = vector.broadcast %cst_46 : f32 to vector<2x32xf32>
    %135 = arith.cmpf ogt, %115, %134 : vector<2x32xf32>
    %136 = arith.mulf %14, %114 : vector<2x32xf32>
    %137 = arith.select %135, %136, %133 : vector<2x32xi1>, vector<2x32xf32>
    %138 = arith.subf %126, %137 : vector<2x32xf32>
    %139 = arith.mulf %11, %138 : vector<2x32xf32>
    %140 = arith.addf %137, %139 : vector<2x32xf32>
    %c3_i32 = arith.constant 3 : i32
    %141 = arith.truncf %140 : vector<2x32xf32> to vector<2x32xbf16>
    %cst_47 = arith.constant dense<0.000000e+00> : vector<2x32xf32>
    %142 = tpu.matmul %141, %18, %cst_47 {dimension_numbers = #tpu.dot_dimension_numbers<[1], [0], [0], [1], [0, 0, 1, 1], [], []>} : vector<2x32xbf16>, vector<32x32xbf16>, vector<2x32xf32> -> vector<2x32xf32>
    %cst_48 = arith.constant 8.000000e-01 : f32
    %143 = vector.broadcast %cst_48 : f32 to vector<2x32xf32>
    %144 = arith.mulf %143, %109 : vector<2x32xf32>
    %145 = arith.addf %144, %142 : vector<2x32xf32>
    %146 = arith.index_cast %c3_i32 : i32 to index
    %c0_49 = arith.constant 0 : index
    %c0_50 = arith.constant 0 : index
    %147 = vector.load %arg2[%146, %c0_49, %c0_50] : memref<4x2x32xf32, #tpu.memory_space<vmem>>, vector<1x2x32xf32>
    %148 = vector.shape_cast %147 : vector<1x2x32xf32> to vector<2x32xf32>
    %149 = arith.addf %145, %148 : vector<2x32xf32>
    %150 = arith.index_cast %c3_i32 : i32 to index
    %c0_51 = arith.constant 0 : index
    %c0_52 = arith.constant 0 : index
    %151 = vector.load %arg5[%150, %c0_51, %c0_52] : memref<4x2x32xf32, #tpu.memory_space<vmem>>, vector<1x2x32xf32>
    %152 = vector.shape_cast %151 : vector<1x2x32xf32> to vector<2x32xf32>
    %153 = vector.shape_cast %149 : vector<2x32xf32> to vector<1x2x32xf32>
    tpu.vector_store %arg5[%150, %c0_51, %c0_52], %153 {strides = array<i32>} : memref<4x2x32xf32, #tpu.memory_space<vmem>>, vector<1x2x32xf32>,
    %154 = arith.addf %149, %2 : vector<2x32xf32>
    %155 = arith.mulf %5, %154 : vector<2x32xf32>
    %156 = math.absf %155 : vector<2x32xf32>
    %cst_53 = arith.constant 0.000000e+00 : f32
    %157 = vector.broadcast %cst_53 : f32 to vector<2x32xf32>
    %158 = arith.subf %157, %156 : vector<2x32xf32>
    %159 = math.exp %158 : vector<2x32xf32>
    %cst_54 = arith.constant 1.000000e+00 : f32
    %160 = vector.broadcast %cst_54 : f32 to vector<2x32xf32>
    %161 = arith.addf %160, %159 : vector<2x32xf32>
    %162 = tpu.reciprocal %161 {approx = true} : vector<2x32xf32> -> vector<2x32xf32>
    %cst_55 = arith.constant 0.000000e+00 : f32
    %163 = vector.broadcast %cst_55 : f32 to vector<2x32xf32>
    %164 = arith.cmpf oge, %155, %163 : vector<2x32xf32>
    %165 = arith.mulf %159, %162 : vector<2x32xf32>
    %166 = arith.select %164, %162, %165 : vector<2x32xi1>, vector<2x32xf32>
    %cst_56 = arith.constant 0.000000e+00 : f32
    %167 = vector.broadcast %cst_56 : f32 to vector<2x32xf32>
    %168 = arith.maximumf %155, %167 : vector<2x32xf32>
    %cst_57 = arith.constant 1.000000e+00 : f32
    %169 = vector.broadcast %cst_57 : f32 to vector<2x32xf32>
    %170 = arith.addf %169, %159 : vector<2x32xf32>
    %171 = math.log %170 : vector<2x32xf32>
    %172 = arith.addf %168, %171 : vector<2x32xf32>
    %173 = arith.mulf %172, %8 : vector<2x32xf32>
    %cst_58 = arith.constant 2.000000e+01 : f32
    %174 = vector.broadcast %cst_58 : f32 to vector<2x32xf32>
    %175 = arith.cmpf ogt, %155, %174 : vector<2x32xf32>
    %176 = arith.mulf %14, %154 : vector<2x32xf32>
    %177 = arith.select %175, %176, %173 : vector<2x32xi1>, vector<2x32xf32>
    %178 = arith.subf %166, %177 : vector<2x32xf32>
    %179 = arith.mulf %11, %178 : vector<2x32xf32>
    %180 = arith.addf %177, %179 : vector<2x32xf32>
    %c4_i32 = arith.constant 4 : i32
    %c0_59 = arith.constant 0 : index
    %c0_60 = arith.constant 0 : index
    %181 = vector.load %arg6[%c0_59, %c0_60] : memref<2x32xf32, #tpu.memory_space<vmem>>, vector<2x32xf32>
    tpu.vector_store %arg6[%c0_59, %c0_60], %149 {strides = array<i32>} : memref<2x32xf32, #tpu.memory_space<vmem>>, vector<2x32xf32>,
    %c0_61 = arith.constant 0 : index
    %c0_62 = arith.constant 0 : index
    %182 = vector.load %arg7[%c0_61, %c0_62] : memref<2x32xf32, #tpu.memory_space<vmem>>, vector<2x32xf32>
    tpu.vector_store %arg7[%c0_61, %c0_62], %180 {strides = array<i32>} : memref<2x32xf32, #tpu.memory_space<vmem>>, vector<2x32xf32>,
    return
  }
  func.func @transform_0(%arg0: i32, %arg1: i32) -> (i32, i32, i32) {
    %c0_i32 = arith.constant 0 : i32
    %c0_i32_0 = arith.constant 0 : i32
    return %arg1, %arg0, %c0_i32 : i32, i32, i32
  }
  func.func @transform_1(%arg0: i32, %arg1: i32) -> (i32, i32) {
    %c0_i32 = arith.constant 0 : i32
    %c0_i32_0 = arith.constant 0 : i32
    %c0_i32_1 = arith.constant 0 : i32
    return %c0_i32, %c0_i32_0 : i32, i32
  }
  func.func @transform_2(%arg0: i32, %arg1: i32) -> (i32, i32) {
    %c0_i32 = arith.constant 0 : i32
    %c0_i32_0 = arith.constant 0 : i32
    %c0_i32_1 = arith.constant 0 : i32
    return %c0_i32, %c0_i32_0 : i32, i32
  }
  func.func @transform_3(%arg0: i32, %arg1: i32) -> (i32, i32, i32) {
    %c0_i32 = arith.constant 0 : i32
    %c0_i32_0 = arith.constant 0 : i32
    return %arg1, %arg0, %c0_i32 : i32, i32, i32
  }
}

</mosaic_0001>

<llo_original>
// kernel: tpu_custom_call.1
$region0: #{tpu_custom_call.1}
  #allocation0 [shape = 'u32[]', space=smem, size = 0x4, offset = 0x4, fixed_abs, tag = 'smem constant byte address 0x4 - core index']
  #allocation1 [shape = 'u32[144,128]{1,0:T(1,128)}', space=vmem, size = 0x12000, scoped, tag = 'internal scratch']
  #allocation2 [shape = 'f32[2,32]{1,0:T(2,128)}', space=vmem, size = 0x400, scoped, tag = 'scratch operand']
  #allocation3 [shape = 'f32[2,32]{1,0:T(2,128)}', space=vmem, size = 0x400, scoped, tag = 'scratch operand']
  %s0 = inlined_call_operand.hbm [shape: f32[8,2,32], index: 0, kind: input, shape index: {}]
  %s1 = inlined_call_operand.hbm [shape: bf16[32,32], index: 1, kind: input, shape index: {}]
  %s2 = inlined_call_operand.hbm [shape: f32[8,32], index: 2, kind: input, shape index: {}]
  %s3 = inlined_call_operand.hbm [shape: f32[8,2,32], index: 3, kind: output, shape index: {}]
  %s4 = sld [smem:[#allocation0]]
  $region61: #{tpu_custom_call.1} parent=0
    _
  %s6 = ssub.s32 1, %s4
  %s7 = scalar_select 0, %s6, %s4
  $region1: #{tpu_custom_call.1} parent=0
    #allocation4 [shape = 'u8[8192]{0}', space=vmem, size = 0x2000, scoped, tag = 'input window, operand 0']
    #allocation5 [shape = 's32[2]{0}', space=sflag, size = 0x8, scoped, tag = 'scoped memory for tpu_custom_call.1']
    #allocation6 [shape = 's32[2]{0}', space=sflag, size = 0x8, scoped, tag = 'scoped memory for tpu_custom_call.1']
    #allocation7 [shape = 'u8[8192]{0}', space=vmem, size = 0x2000, scoped, tag = 'input window, operand 1, single buffered']
    #allocation8 [shape = 's32[1]{0}', space=sflag, size = 0x4, scoped, tag = 'scoped memory for tpu_custom_call.1']
    #allocation9 [shape = 'u8[4096]{0}', space=vmem, size = 0x1000, scoped, tag = 'input window, operand 2, single buffered']
    #allocation10 [shape = 'u8[8192]{0}', space=vmem, size = 0x2000, scoped, tag = 'output window, operand 0']
    %8 = vsyncpa [#allocation5], 0
    %s9 = scalar_lea.sflag [#allocation5], 1
    %10 = vsyncpa %s9, 0
    %11 = vsyncpa [#allocation8], 0
    %12 = vsyncpa [#allocation6], 0
    %s13 = scalar_lea.sflag [#allocation6], 1
    %14 = vsyncpa %s13, 0
    loop: start=0, step=1, limit=4
    $region2: #{tpu_custom_call.1} parent=1 // loop_pre_header
      _
    $region3: #{tpu_custom_call.1} parent=1 // loop_header
      %s16 = sphi 0, %s20
      %p17 = scmp.ge.s32.totalorder %s16, 4
      %s23 = sphi 0, %s35
      %s24 = sphi 0, %s31
      %s25 = sphi 0, %s23
      %s26 = sphi 0, %s24
      %s27 = sphi 0, %s25
      %s28 = sphi 0, %s26
      %s40 = sphi 0, %s42
      %s43 = sphi 0, %s40
      %s44 = sphi 0, %s43
      %s60 = sphi 0, %s44
      %s64 = sphi 0, %s64
      %s66 = sphi 0, %s64
      %s67 = sphi 0, %s66
      %s81 = sphi 0, %s67
      %s85 = sphi 0, %s85
      %s87 = sphi 0, %s85
      %s88 = sphi 0, %s87
      %s102 = sphi 0, %s88
      %s110 = sphi 0, %s112
      %s113 = sphi 0, %s110
      %s114 = sphi 0, %s113
      %s130 = sphi 0, %s114
    $region4: #{tpu_custom_call.1} parent=1 // loop_header_branch
      %19 = sbr.rel (%p17) target = $region8
    $region5: #{tpu_custom_call.1} parent=1 // loop_body
      %s21 = ssub.s32 %s16, 1
      %s22 = ssub.s32 %s16, 2
      %s29 = sadd.s32 1, %s24
      %p30 = scmp.ge.s32.totalorder %s29, 2
      %s31 = scalar_select %p30, 0, %s29
      %s32 = sadd.s32 1, %s23
      %s33 = scalar_select %p30, %s32, %s23
      %p34 = scmp.ge.s32.totalorder %s33, 1
      %s35 = scalar_select %p34, 0, %s33
      %s36 = ssub.s32 %s24, %s31
      %s37 = ssub.s32 %s23, %s35
      %s38 = sor.u32 %s36, %s37
      %p39 = scmp.eq.s32.totalorder %s38, 0
      %s41 = sadd.s32 %s40, 1
      %s42 = scalar_select %p39, %s40, %s41
      %p45 = pneg %p39
      %p46 = scmp.eq.s32.totalorder %s16, 1
      %p47 = por %p45, %p46
      %p48 = scmp.ne.s32.totalorder %s40, %s43
      %p49 = scmp.eq.s32.totalorder %s16, 0
      %p50 = por %p48, %p49
      %p51 = scmp.ne.s32.totalorder %s40, %s43
      %p52 = scmp.eq.s32.totalorder %s21, 1
      %p53 = por %p51, %p52
      %p54 = scmp.ne.s32.totalorder %s43, %s44
      %p55 = scmp.eq.s32.totalorder %s21, 0
      %p56 = por %p54, %p55
      %p57 = scmp.ne.s32.totalorder %s43, %s44
      %p58 = scmp.eq.s32.totalorder %s22, 1
      %p59 = por %p57, %p58
      %p61 = scmp.ne.s32.totalorder %s44, %s60
      %p62 = scmp.eq.s32.totalorder %s22, 0
      %p63 = por %p61, %p62
      %s65 = sadd.s32 %s64, 1
      %p68 = scmp.eq.s32.totalorder %s16, 1
      %p69 = scmp.ne.s32.totalorder %s64, %s66
      %p70 = scmp.eq.s32.totalorder %s16, 0
      %p71 = por %p69, %p70
      %p72 = scmp.ne.s32.totalorder %s64, %s66
      %p73 = scmp.eq.s32.totalorder %s21, 1
      %p74 = por %p72, %p73
      %p75 = scmp.ne.s32.totalorder %s66, %s67
      %p76 = scmp.eq.s32.totalorder %s21, 0
      %p77 = por %p75, %p76
      %p78 = scmp.ne.s32.totalorder %s66, %s67
      %p79 = scmp.eq.s32.totalorder %s22, 1
      %p80 = por %p78, %p79
      %p82 = scmp.ne.s32.totalorder %s67, %s81
      %p83 = scmp.eq.s32.totalorder %s22, 0
      %p84 = por %p82, %p83
      %s86 = sadd.s32 %s85, 1
      %p89 = scmp.eq.s32.totalorder %s16, 1
      %p90 = scmp.ne.s32.totalorder %s85, %s87
      %p91 = scmp.eq.s32.totalorder %s16, 0
      %p92 = por %p90, %p91
      %p93 = scmp.ne.s32.totalorder %s85, %s87
      %p94 = scmp.eq.s32.totalorder %s21, 1
      %p95 = por %p93, %p94
      %p96 = scmp.ne.s32.totalorder %s87, %s88
      %p97 = scmp.eq.s32.totalorder %s21, 0
      %p98 = por %p96, %p97
      %p99 = scmp.ne.s32.totalorder %s87, %s88
      %p100 = scmp.eq.s32.totalorder %s22, 1
      %p101 = por %p99, %p100
      %p103 = scmp.ne.s32.totalorder %s88, %s102
      %p104 = scmp.eq.s32.totalorder %s22, 0
      %p105 = por %p103, %p104
      %s106 = ssub.s32 %s24, %s31
      %s107 = ssub.s32 %s23, %s35
      %s108 = sor.u32 %s106, %s107
      %p109 = scmp.eq.s32.totalorder %s108, 0
      %s111 = sadd.s32 %s110, 1
      %s112 = scalar_select %p109, %s110, %s111
      %p115 = pneg %p109
      %p116 = scmp.eq.s32.totalorder %s16, 1
      %p117 = por %p115, %p116
      %p118 = scmp.ne.s32.totalorder %s110, %s113
      %p119 = scmp.eq.s32.totalorder %s16, 0
      %p120 = por %p118, %p119
      %p121 = scmp.ne.s32.totalorder %s110, %s113
      %p122 = scmp.eq.s32.totalorder %s21, 1
      %p123 = por %p121, %p122
      %p124 = scmp.ne.s32.totalorder %s113, %s114
      %p125 = scmp.eq.s32.totalorder %s21, 0
      %p126 = por %p124, %p125
      %p127 = scmp.ne.s32.totalorder %s113, %s114
      %p128 = scmp.eq.s32.totalorder %s22, 1
      %p129 = por %p127, %p128
      %p131 = scmp.ne.s32.totalorder %s114, %s130
      %p132 = scmp.eq.s32.totalorder %s22, 0
      %p133 = por %p131, %p132
      %p134 = scmp.le.s32.totalorder 1, %s16
      %p135 = scmp.lt.s32.totalorder %s16, 3
      %p136 = pnand %p134, %p135
      %p137 = pneg %p136
      // Predicated region
      $region9: #{tpu_custom_call.1} parent=5 // pred_check
        _
      $region10: #{tpu_custom_call.1} parent=5 // pred_check_branch
        %139 = sbr.rel (%p136) target = $region12
      $region11: #{tpu_custom_call.1} parent=5 // pred_region
        %s140 = ssub.s32 %s16, 1
        // Predicated region
        $region13: #{tpu_custom_call.1} parent=11 // pred_check
          %p141 = pneg %p77
        $region14: #{tpu_custom_call.1} parent=11 // pred_check_branch
          %143 = sbr.rel (%p141) target = $region16
        $region15: #{tpu_custom_call.1} parent=11 // pred_region
          %s145 = ssub.s32 256, 256
          %146 = vsyncadd [#allocation8], %s145
          %s147 = sshll.u32 [#allocation7], 4
          %s148 = int_to_ptr.vmem [resolvable:$true] %s147
          %153 = dma.hbm_to_vmem [thread:$0]  %s1, 256, %s148, [#allocation8], 64, 64, 4
        $region16: #{tpu_custom_call.1} parent=11 // pred_fallthru
          _
        // Predicated region
        $region17: #{tpu_custom_call.1} parent=11 // pred_check
          %p154 = pneg %p98
        $region18: #{tpu_custom_call.1} parent=11 // pred_check_branch
          %156 = sbr.rel (%p154) target = $region20
        $region19: #{tpu_custom_call.1} parent=11 // pred_region
          %s158 = ssub.s32 128, 128
          %159 = vsyncadd [#allocation8], %s158
          %s161 = sshll.u32 [#allocation9], 4
          %s162 = int_to_ptr.vmem [resolvable:$true] %s161
          %164 = dma.hbm_to_vmem [thread:$0]  %s2, 128, %s162, [#allocation8]
        $region20: #{tpu_custom_call.1} parent=11 // pred_fallthru
          _
      $region12: #{tpu_custom_call.1} parent=5 // pred_fallthru
        _
      %p165 = scmp.lt.s32.totalorder %s16, 2
      // Predicated region
      $region21: #{tpu_custom_call.1} parent=5 // pred_check
        %p166 = pneg %p165
      $region22: #{tpu_custom_call.1} parent=5 // pred_check_branch
        %168 = sbr.rel (%p166) target = $region24
      $region23: #{tpu_custom_call.1} parent=5 // pred_region
        // Predicated region
        $region25: #{tpu_custom_call.1} parent=23 // pred_check
          %p169 = pneg %p50
        $region26: #{tpu_custom_call.1} parent=23 // pred_check_branch
          %171 = sbr.rel (%p169) target = $region28
        $region27: #{tpu_custom_call.1} parent=23 // pred_region
          %s172 = sand.u32 %s40, 1
          %s173 = scalar_lea.sflag [#allocation5], %s172
          %s174 = sand.u32 %s40, 1
          %s175 = smul.addr %s174, 8
          %s176 = scalar_lea.vmem [#allocation4], %s175
          %s177 = smul.u32 4, %s24
          %s179 = ssub.s32 128, 128
          %180 = vsyncadd %s173, %s179
          %s181 = sadd.s32 %s23, %s177
          %s182 = smul.addr %s181, 32
          %s183 = scalar_lea.hbm %s0, %s182
          %s184 = sshll.u32 %s176, 4
          %s185 = int_to_ptr.vmem [resolvable:$true] %s184
          %190 = dma.hbm_to_vmem [thread:$0]  %s183, 128, %s185, %s173, 32, 32, 2
        $region28: #{tpu_custom_call.1} parent=23 // pred_fallthru
          _
      $region24: #{tpu_custom_call.1} parent=5 // pred_fallthru
        _
      %p191 = scmp.le.s32.totalorder 1, %s16
      %p192 = scmp.lt.s32.totalorder %s16, 3
      %p193 = pnand %p191, %p192
      %p194 = pneg %p193
      // Predicated region
      $region29: #{tpu_custom_call.1} parent=5 // pred_check
        _
      $region30: #{tpu_custom_call.1} parent=5 // pred_check_branch
        %196 = sbr.rel (%p193) target = $region32
      $region31: #{tpu_custom_call.1} parent=5 // pred_region
        %s197 = ssub.s32 %s16, 1
        %s198 = sand.u32 %s43, 1
        %s199 = scalar_lea.sflag [#allocation5], %s198
        %s200 = sand.u32 %s43, 1
        %s201 = smul.addr %s200, 8
        %s202 = scalar_lea.vmem [#allocation4], %s201
        // Predicated region
        $region33: #{tpu_custom_call.1} parent=31 // pred_check
          %p203 = pneg %p56
        $region34: #{tpu_custom_call.1} parent=31 // pred_check_branch
          %205 = sbr.rel (%p203) target = $region36
        $region35: #{tpu_custom_call.1} parent=31 // pred_region
          %206 = dma.done %s199, 128
        $region36: #{tpu_custom_call.1} parent=31 // pred_fallthru
          _
        // Predicated region
        $region37: #{tpu_custom_call.1} parent=31 // pred_check
          %p207 = pneg %p77
        $region38: #{tpu_custom_call.1} parent=31 // pred_check_branch
          %209 = sbr.rel (%p207) target = $region40
        $region39: #{tpu_custom_call.1} parent=31 // pred_region
          %210 = dma.done [#allocation8], 256
        $region40: #{tpu_custom_call.1} parent=31 // pred_fallthru
          _
        // Predicated region
        $region41: #{tpu_custom_call.1} parent=31 // pred_check
          %p211 = pneg %p98
        $region42: #{tpu_custom_call.1} parent=31 // pred_check_branch
          %213 = sbr.rel (%p211) target = $region44
        $region43: #{tpu_custom_call.1} parent=31 // pred_region
          %214 = dma.done [#allocation8], 128
        $region44: #{tpu_custom_call.1} parent=31 // pred_fallthru
          _
        %s215 = sand.u32 %s43, 1
        %s216 = scalar_lea.sflag [#allocation5], %s215
        %s217 = sand.u32 %s43, 1
        %s218 = smul.addr %s217, 8
        %s219 = scalar_lea.vmem [#allocation4], %s218
        %p220 = pneg %p56
        %p221 = pneg %p53
        %p222 = pneg %p77
        %p223 = pneg %p74
        %p224 = pneg %p98
        %p225 = pneg %p95
        %p226 = pneg %p126
        %p227 = pneg %p123
        %s228 = sand.u32 %s113, 1
        %s229 = scalar_lea.sflag [#allocation6], %s228
        %s230 = sand.u32 %s113, 1
        %s231 = smul.addr %s230, 8
        %s232 = scalar_lea.vmem [#allocation10], %s231
        %s233 = smul.u32 4, %s26
        %s234 = smul.u32 4, %s26
        %v236 = vld [vmem:[#allocation9 + $0x1] sm:$0x1]
        %v237 = vlaneseq
        %v238 = vshrl.u32 %v237, 7
        %v239 = vsub.s32 0, %v238
        %v240 = vrot.slane %v236, %v239
        %v241 = vld [vmem:[#allocation9 + $0x2] sm:$0x1]
        %v242 = vlaneseq
        %v243 = vshrl.u32 %v242, 7
        %v244 = vsub.s32 0, %v243
        %v245 = vrot.slane %v241, %v244
        %v246 = vld [vmem:[#allocation9 + $0x3] sm:$0x1]
        %v247 = vlaneseq
        %v248 = vshrl.u32 %v247, 7
        %v249 = vsub.s32 0, %v248
        %v250 = vrot.slane %v246, %v249
        %v251 = vld [vmem:[#allocation9 + $0x4] sm:$0x1]
        %v252 = vlaneseq
        %v253 = vshrl.u32 %v252, 7
        %v254 = vsub.s32 0, %v253
        %v255 = vrot.slane %v251, %v254
        %v256 = vld [vmem:[#allocation9 + $0x5] sm:$0x1]
        %v257 = vlaneseq
        %v258 = vshrl.u32 %v257, 7
        %v259 = vsub.s32 0, %v258
        %v260 = vrot.slane %v256, %v259
        %p261 = scmp.eq.s32.totalorder %s26, 0
        // Predicated region
        $region45: #{tpu_custom_call.1} parent=31 // pred_check
          %p262 = pneg %p261
        $region46: #{tpu_custom_call.1} parent=31 // pred_check_branch
          %264 = sbr.rel (%p262) target = $region48
        $region47: #{tpu_custom_call.1} parent=31 // pred_region
          %v265 = vld [vmem:[#allocation9] sm:$0x1]
          %v266 = vlaneseq
          %v267 = vshrl.u32 %v266, 7
          %v268 = vsub.s32 0, %v267
          %v269 = vrot.slane %v265, %v268
          %vm270 = vcmask 254976
          %271 = vst.msk [vmem:[#allocation2] sm:$0x3] %vm270, %v269
          %v272 = vmul.f32 %v245, %v269
          %v273 = vand.u32 2147483647, %v272
          %v274 = vsub.f32 0.0, %v273
          %v275 = vmul.f32 %v274, 1.442695
          %v276 = vpow.pop %v275
          %v277 = vadd.f32 %v276, 1.0
          %v278 = vrcp.pop %v277
          %vm279 = vcmp.ge.f32.partialorder %v272, 0.0
          %v280 = vmul.f32 %v276, %v278
          %v281 = vsel %vm279, %v278, %v280
          %v282 = vmax.f32 %v272, 0.0
          %v283 = vlog2.pop %v277
          %v284 = vmul.f32 %v283, 0.6931472
          %v285 = vadd.f32 %v282, %v284
          %v286 = vmul.f32 %v285, %v250
          %vm287 = vcmp.gt.f32.partialorder %v272, 20.0
          %v288 = vmul.f32 %v260, %v269
          %v289 = vsel %vm287, %v288, %v286
          %v290 = vsub.f32 %v281, %v289
          %v291 = vmul.f32 %v255, %v290
          %v292 = vadd.f32 %v289, %v291
          %293 = vst.msk [vmem:[#allocation3] sm:$0x3] %vm270, %v292
        $region48: #{tpu_custom_call.1} parent=31 // pred_fallthru
          _
        %v294 = vld [vmem:[#allocation7] sm:$0xf]
        %v295 = vld [vmem:[#allocation7 + $0x4] sm:$0xf]
        %v296 = vld [vmem:[#allocation7 + $0x8] sm:$0xf]
        %v297 = vld [vmem:[#allocation7 + $0xc] sm:$0xf]
        %v298 = vld [vmem:[#allocation2] sm:$0x3]
        %v299 = vld [vmem:[#allocation3] sm:$0x3]
        %v300 = vpack.c.bf16 %v299, %v299
        %v305 = vunpack.c.l.b16 %v294
        %v306 = vunpack.c.l.b16 %v295
        %v307 = vunpack.c.l.b16 %v296
        %v308 = vunpack.c.l.b16 %v297
        %v309 = vpack.c.b16 %v306, %v305
        %v310 = vpack.c.b16 %v308, %v307
        %vm313 = vcmask 261120
        %v315 = vsel %vm313, %v300, 0
        %317 = vmatprep.subr.bf16.mxu0 0
        %318 = vmatpush1.bf16.msra.mxu0 %v309
        %319 = vmatprep.subr.bf16.mxu0 0
        %320 = vmatpush1.bf16.msra.mxu0 %v310
        %321 = vmatprep.subr.bf16.mxu0 0
        %322 = vmatpush1.bf16.msra.mxu0 0
        %323 = vmatprep.subr.bf16.mxu0 0
        %324 = vmatpush1.bf16.msra.mxu0 0
        %325 = vmatprep.subr.bf16.mxu0 0
        %326 = vmatpush1.bf16.msra.mxu0 0
        %327 = vmatprep.subr.bf16.mxu0 0
        %328 = vmatpush1.bf16.msra.mxu0 0
        %329 = vmatprep.subr.bf16.mxu0 0
        %330 = vmatpush1.bf16.msra.mxu0 0
        %331 = vmatprep.subr.bf16.mxu0 0
        %332 = vmatpush1.bf16.msra.mxu0 0
        %333 = vmatprep.subr.bf16.mxu0 0
        %334 = vmatpush1.bf16.msra.mxu0 0
        %335 = vmatprep.subr.bf16.mxu0 0
        %336 = vmatpush1.bf16.msra.mxu0 0
        %337 = vmatprep.subr.bf16.mxu0 0
        %338 = vmatpush1.bf16.msra.mxu0 0
        %339 = vmatprep.subr.bf16.mxu0 0
        %340 = vmatpush1.bf16.msra.mxu0 0
        %341 = vmatprep.subr.bf16.mxu0 0
        %342 = vmatpush1.bf16.msra.mxu0 0
        %343 = vmatprep.subr.bf16.mxu0 0
        %344 = vmatpush1.bf16.msra.mxu0 0
        %345 = vmatprep.subr.bf16.mxu0 0
        %346 = vmatpush1.bf16.msra.mxu0 0
        %347 = vmatprep.subr.bf16.mxu0 0
        %348 = vmatpush1.bf16.msra.mxu0 0
        %349 = vmatprep.mubr.bf16.mxu0 0
        %350 = vmatmul.mubr.bf16.gmra.mrb[0].mxu0 %v315
        %v351 = vpop.f32.mrb[0].mxu0
        %v352 = vadd.f32 0.0, %v351
        %v353 = vpop.f32.mrb[0].mxu0
        %v354 = vpop.f32.mrb[0].mxu0
        %v355 = vpop.f32.mrb[0].mxu0
        %356 = vdwg.mxu0
        %v357 = vmul.f32 %v298, 0.8
        %v358 = vadd.f32 %v357, %v352
        %v359 = vld [vmem:[%s202] sm:$0x3]
        %v360 = vadd.f32 %v358, %v359
        %vm361 = vcmask 254976
        %362 = vst.msk [vmem:[%s232] sm:$0x3] %vm361, %v360
        %v363 = vadd.f32 %v360, %v240
        %v364 = vmul.f32 %v245, %v363
        %v365 = vand.u32 2147483647, %v364
        %v366 = vsub.f32 0.0, %v365
        %v367 = vmul.f32 %v366, 1.442695
        %v368 = vpow.pop %v367
        %v369 = vadd.f32 %v368, 1.0
        %v370 = vrcp.pop %v369
        %vm371 = vcmp.ge.f32.partialorder %v364, 0.0
        %v372 = vmul.f32 %v368, %v370
        %v373 = vsel %vm371, %v370, %v372
        %v374 = vmax.f32 %v364, 0.0
        %v375 = vlog2.pop %v369
        %v376 = vmul.f32 %v375, 0.6931472
        %v377 = vadd.f32 %v374, %v376
        %v378 = vmul.f32 %v377, %v250
        %vm379 = vcmp.gt.f32.partialorder %v364, 20.0
        %v380 = vmul.f32 %v260, %v363
        %v381 = vsel %vm379, %v380, %v378
        %v382 = vsub.f32 %v373, %v381
        %v383 = vmul.f32 %v255, %v382
        %v384 = vadd.f32 %v381, %v383
        %v385 = vpack.c.bf16 %v384, %v384
        %v387 = vsel %vm313, %v385, 0
        %389 = vmatprep.subr.bf16.mxu0 0
        %390 = vmatpush1.bf16.msra.mxu0 %v309
        %391 = vmatprep.subr.bf16.mxu0 0
        %392 = vmatpush1.bf16.msra.mxu0 %v310
        %393 = vmatprep.subr.bf16.mxu0 0
        %394 = vmatpush1.bf16.msra.mxu0 0
        %395 = vmatprep.subr.bf16.mxu0 0
        %396 = vmatpush1.bf16.msra.mxu0 0
        %397 = vmatprep.subr.bf16.mxu0 0
        %398 = vmatpush1.bf16.msra.mxu0 0
        %399 = vmatprep.subr.bf16.mxu0 0
        %400 = vmatpush1.bf16.msra.mxu0 0
        %401 = vmatprep.subr.bf16.mxu0 0
        %402 = vmatpush1.bf16.msra.mxu0 0
        %403 = vmatprep.subr.bf16.mxu0 0
        %404 = vmatpush1.bf16.msra.mxu0 0
        %405 = vmatprep.subr.bf16.mxu0 0
        %406 = vmatpush1.bf16.msra.mxu0 0
        %407 = vmatprep.subr.bf16.mxu0 0
        %408 = vmatpush1.bf16.msra.mxu0 0
        %409 = vmatprep.subr.bf16.mxu0 0
        %410 = vmatpush1.bf16.msra.mxu0 0
        %411 = vmatprep.subr.bf16.mxu0 0
        %412 = vmatpush1.bf16.msra.mxu0 0
        %413 = vmatprep.subr.bf16.mxu0 0
        %414 = vmatpush1.bf16.msra.mxu0 0
        %415 = vmatprep.subr.bf16.mxu0 0
        %416 = vmatpush1.bf16.msra.mxu0 0
        %417 = vmatprep.subr.bf16.mxu0 0
        %418 = vmatpush1.bf16.msra.mxu0 0
        %419 = vmatprep.subr.bf16.mxu0 0
        %420 = vmatpush1.bf16.msra.mxu0 0
        %421 = vmatprep.mubr.bf16.mxu0 0
        %422 = vmatmul.mubr.bf16.gmra.mrb[0].mxu0 %v387
        %v423 = vpop.f32.mrb[0].mxu0
        %v424 = vadd.f32 0.0, %v423
        %v425 = vpop.f32.mrb[0].mxu0
        %v426 = vpop.f32.mrb[0].mxu0
        %v427 = vpop.f32.mrb[0].mxu0
        %428 = vdwg.mxu0
        %v429 = vmul.f32 %v360, 0.8
        %v430 = vadd.f32 %v429, %v424
        %s431 = scalar_lea.vmem %s202, 2 [#allocation4]
        %v432 = vld [vmem:[%s431] sm:$0x3]
        %v433 = vadd.f32 %v430, %v432
        %s434 = scalar_lea.vmem %s232, 2 [#allocation10]
        %435 = vst.msk [vmem:[%s434] sm:$0x3] %vm361, %v433
        %v436 = vadd.f32 %v433, %v240
        %v437 = vmul.f32 %v245, %v436
        %v438 = vand.u32 2147483647, %v437
        %v439 = vsub.f32 0.0, %v438
        %v440 = vmul.f32 %v439, 1.442695
        %v441 = vpow.pop %v440
        %v442 = vadd.f32 %v441, 1.0
        %v443 = vrcp.pop %v442
        %vm444 = vcmp.ge.f32.partialorder %v437, 0.0
        %v445 = vmul.f32 %v441, %v443
        %v446 = vsel %vm444, %v443, %v445
        %v447 = vmax.f32 %v437, 0.0
        %v448 = vlog2.pop %v442
        %v449 = vmul.f32 %v448, 0.6931472
        %v450 = vadd.f32 %v447, %v449
        %v451 = vmul.f32 %v450, %v250
        %vm452 = vcmp.gt.f32.partialorder %v437, 20.0
        %v453 = vmul.f32 %v260, %v436
        %v454 = vsel %vm452, %v453, %v451
        %v455 = vsub.f32 %v446, %v454
        %v456 = vmul.f32 %v255, %v455
        %v457 = vadd.f32 %v454, %v456
        %v458 = vpack.c.bf16 %v457, %v457
        %v460 = vsel %vm313, %v458, 0
        %462 = vmatprep.subr.bf16.mxu0 0
        %463 = vmatpush1.bf16.msra.mxu0 %v309
        %464 = vmatprep.subr.bf16.mxu0 0
        %465 = vmatpush1.bf16.msra.mxu0 %v310
        %466 = vmatprep.subr.bf16.mxu0 0
        %467 = vmatpush1.bf16.msra.mxu0 0
        %468 = vmatprep.subr.bf16.mxu0 0
        %469 = vmatpush1.bf16.msra.mxu0 0
        %470 = vmatprep.subr.bf16.mxu0 0
        %471 = vmatpush1.bf16.msra.mxu0 0
        %472 = vmatprep.subr.bf16.mxu0 0
        %473 = vmatpush1.bf16.msra.mxu0 0
        %474 = vmatprep.subr.bf16.mxu0 0
        %475 = vmatpush1.bf16.msra.mxu0 0
        %476 = vmatprep.subr.bf16.mxu0 0
        %477 = vmatpush1.bf16.msra.mxu0 0
        %478 = vmatprep.subr.bf16.mxu0 0
        %479 = vmatpush1.bf16.msra.mxu0 0
        %480 = vmatprep.subr.bf16.mxu0 0
        %481 = vmatpush1.bf16.msra.mxu0 0
        %482 = vmatprep.subr.bf16.mxu0 0
        %483 = vmatpush1.bf16.msra.mxu0 0
        %484 = vmatprep.subr.bf16.mxu0 0
        %485 = vmatpush1.bf16.msra.mxu0 0
        %486 = vmatprep.subr.bf16.mxu0 0
        %487 = vmatpush1.bf16.msra.mxu0 0
        %488 = vmatprep.subr.bf16.mxu0 0
        %489 = vmatpush1.bf16.msra.mxu0 0
        %490 = vmatprep.subr.bf16.mxu0 0
        %491 = vmatpush1.bf16.msra.mxu0 0
        %492 = vmatprep.subr.bf16.mxu0 0
        %493 = vmatpush1.bf16.msra.mxu0 0
        %494 = vmatprep.mubr.bf16.mxu0 0
        %495 = vmatmul.mubr.bf16.gmra.mrb[0].mxu0 %v460
        %v496 = vpop.f32.mrb[0].mxu0
        %v497 = vadd.f32 0.0, %v496
        %v498 = vpop.f32.mrb[0].mxu0
        %v499 = vpop.f32.mrb[0].mxu0
        %v500 = vpop.f32.mrb[0].mxu0
        %501 = vdwg.mxu0
        %v502 = vmul.f32 %v433, 0.8
        %v503 = vadd.f32 %v502, %v497
        %s504 = scalar_lea.vmem %s202, 4 [#allocation4]
        %v505 = vld [vmem:[%s504] sm:$0x3]
        %v506 = vadd.f32 %v503, %v505
        %s507 = scalar_lea.vmem %s232, 4 [#allocation10]
        %508 = vst.msk [vmem:[%s507] sm:$0x3] %vm361, %v506
        %v509 = vadd.f32 %v506, %v240
        %v510 = vmul.f32 %v245, %v509
        %v511 = vand.u32 2147483647, %v510
        %v512 = vsub.f32 0.0, %v511
        %v513 = vmul.f32 %v512, 1.442695
        %v514 = vpow.pop %v513
        %v515 = vadd.f32 %v514, 1.0
        %v516 = vrcp.pop %v515
        %vm517 = vcmp.ge.f32.partialorder %v510, 0.0
        %v518 = vmul.f32 %v514, %v516
        %v519 = vsel %vm517, %v516, %v518
        %v520 = vmax.f32 %v510, 0.0
        %v521 = vlog2.pop %v515
        %v522 = vmul.f32 %v521, 0.6931472
        %v523 = vadd.f32 %v520, %v522
        %v524 = vmul.f32 %v523, %v250
        %vm525 = vcmp.gt.f32.partialorder %v510, 20.0
        %v526 = vmul.f32 %v260, %v509
        %v527 = vsel %vm525, %v526, %v524
        %v528 = vsub.f32 %v519, %v527
        %v529 = vmul.f32 %v255, %v528
        %v530 = vadd.f32 %v527, %v529
        %v531 = vpack.c.bf16 %v530, %v530
        %v533 = vsel %vm313, %v531, 0
        %535 = vmatprep.subr.bf16.mxu0 0
        %536 = vmatpush1.bf16.msra.mxu0 %v309
        %537 = vmatprep.subr.bf16.mxu0 0
        %538 = vmatpush1.bf16.msra.mxu0 %v310
        %539 = vmatprep.subr.bf16.mxu0 0
        %540 = vmatpush1.bf16.msra.mxu0 0
        %541 = vmatprep.subr.bf16.mxu0 0
        %542 = vmatpush1.bf16.msra.mxu0 0
        %543 = vmatprep.subr.bf16.mxu0 0
        %544 = vmatpush1.bf16.msra.mxu0 0
        %545 = vmatprep.subr.bf16.mxu0 0
        %546 = vmatpush1.bf16.msra.mxu0 0
        %547 = vmatprep.subr.bf16.mxu0 0
        %548 = vmatpush1.bf16.msra.mxu0 0
        %549 = vmatprep.subr.bf16.mxu0 0
        %550 = vmatpush1.bf16.msra.mxu0 0
        %551 = vmatprep.subr.bf16.mxu0 0
        %552 = vmatpush1.bf16.msra.mxu0 0
        %553 = vmatprep.subr.bf16.mxu0 0
        %554 = vmatpush1.bf16.msra.mxu0 0
        %555 = vmatprep.subr.bf16.mxu0 0
        %556 = vmatpush1.bf16.msra.mxu0 0
        %557 = vmatprep.subr.bf16.mxu0 0
        %558 = vmatpush1.bf16.msra.mxu0 0
        %559 = vmatprep.subr.bf16.mxu0 0
        %560 = vmatpush1.bf16.msra.mxu0 0
        %561 = vmatprep.subr.bf16.mxu0 0
        %562 = vmatpush1.bf16.msra.mxu0 0
        %563 = vmatprep.subr.bf16.mxu0 0
        %564 = vmatpush1.bf16.msra.mxu0 0
        %565 = vmatprep.subr.bf16.mxu0 0
        %566 = vmatpush1.bf16.msra.mxu0 0
        %567 = vmatprep.mubr.bf16.mxu0 0
        %568 = vmatmul.mubr.bf16.gmra.mrb[0].mxu0 %v533
        %v569 = vpop.f32.mrb[0].mxu0
        %v570 = vadd.f32 0.0, %v569
        %v571 = vpop.f32.mrb[0].mxu0
        %v572 = vpop.f32.mrb[0].mxu0
        %v573 = vpop.f32.mrb[0].mxu0
        %574 = vdwg.mxu0
        %v575 = vmul.f32 %v506, 0.8
        %v576 = vadd.f32 %v575, %v570
        %s577 = scalar_lea.vmem %s202, 6 [#allocation4]
        %v578 = vld [vmem:[%s577] sm:$0x3]
        %v579 = vadd.f32 %v576, %v578
        %s580 = scalar_lea.vmem %s232, 6 [#allocation10]
        %581 = vst.msk [vmem:[%s580] sm:$0x3] %vm361, %v579
        %v582 = vadd.f32 %v579, %v240
        %v583 = vmul.f32 %v245, %v582
        %v584 = vand.u32 2147483647, %v583
        %v585 = vsub.f32 0.0, %v584
        %v586 = vmul.f32 %v585, 1.442695
        %v587 = vpow.pop %v586
        %v588 = vadd.f32 %v587, 1.0
        %v589 = vrcp.pop %v588
        %vm590 = vcmp.ge.f32.partialorder %v583, 0.0
        %v591 = vmul.f32 %v587, %v589
        %v592 = vsel %vm590, %v589, %v591
        %v593 = vmax.f32 %v583, 0.0
        %v594 = vlog2.pop %v588
        %v595 = vmul.f32 %v594, 0.6931472
        %v596 = vadd.f32 %v593, %v595
        %v597 = vmul.f32 %v596, %v250
        %vm598 = vcmp.gt.f32.partialorder %v583, 20.0
        %v599 = vmul.f32 %v260, %v582
        %v600 = vsel %vm598, %v599, %v597
        %v601 = vsub.f32 %v592, %v600
        %v602 = vmul.f32 %v255, %v601
        %v603 = vadd.f32 %v600, %v602
        %604 = vst.msk [vmem:[#allocation2] sm:$0x3] %vm361, %v579
        %605 = vst.msk [vmem:[#allocation3] sm:$0x3] %vm361, %v603
        %s606 = sand.u32 %s113, 1
        %s607 = scalar_lea.sflag [#allocation6], %s606
        %s608 = sand.u32 %s113, 1
        %s609 = smul.addr %s608, 8
        %s610 = scalar_lea.vmem [#allocation10], %s609
        // Predicated region
        $region49: #{tpu_custom_call.1} parent=31 // pred_check
          %p611 = pneg %p123
        $region50: #{tpu_custom_call.1} parent=31 // pred_check_branch
          %613 = sbr.rel (%p611) target = $region52
        $region51: #{tpu_custom_call.1} parent=31 // pred_region
          %s614 = smul.u32 4, %s26
          %s616 = ssub.s32 128, 128
          %617 = vsyncadd %s607, %s616
          %s618 = sadd.s32 %s25, %s614
          %s619 = smul.addr %s618, 32
          %s620 = scalar_lea.hbm %s3, %s619
          %s621 = sshll.u32 %s610, 4
          %s622 = int_to_ptr.vmem [resolvable:$true] %s621
          %627 = dma.vmem_to_hbm [thread:$0]  %s622, 128, %s620, %s607, 32, 32, 2
        $region52: #{tpu_custom_call.1} parent=31 // pred_fallthru
          _
      $region32: #{tpu_custom_call.1} parent=5 // pred_fallthru
        _
      %p628 = scmp.le.s32.totalorder 2, %s16
      // Predicated region
      $region53: #{tpu_custom_call.1} parent=5 // pred_check
        %p629 = pneg %p628
      $region54: #{tpu_custom_call.1} parent=5 // pred_check_branch
        %631 = sbr.rel (%p629) target = $region56
      $region55: #{tpu_custom_call.1} parent=5 // pred_region
        %s632 = ssub.s32 %s16, 2
        // Predicated region
        $region57: #{tpu_custom_call.1} parent=55 // pred_check
          %p633 = pneg %p129
        $region58: #{tpu_custom_call.1} parent=55 // pred_check_branch
          %635 = sbr.rel (%p633) target = $region60
        $region59: #{tpu_custom_call.1} parent=55 // pred_region
          %s636 = sand.u32 %s114, 1
          %s637 = scalar_lea.sflag [#allocation6], %s636
          %s638 = sand.u32 %s114, 1
          %s639 = smul.addr %s638, 8
          %s640 = scalar_lea.vmem [#allocation10], %s639
          %641 = dma.done %s637, 128
        $region60: #{tpu_custom_call.1} parent=55 // pred_fallthru
          _
      $region56: #{tpu_custom_call.1} parent=5 // pred_fallthru
        _
    $region6: #{tpu_custom_call.1} parent=1 // loop_footer
      %s20 = sadd.s32 1, %s16
    $region7: #{tpu_custom_call.1} parent=1 // loop_footer_branch
      %15 = sbr.rel target = $region3
    $region8: #{tpu_custom_call.1} parent=1 // loop_exit
      _
    %642 = vsyncpa [#allocation5], 1
    %s643 = scalar_lea.sflag [#allocation5], 1
    %644 = vsyncpa %s643, 1
    %645 = vsyncpa [#allocation8], 1
    %646 = vsyncpa [#allocation6], 1
    %s647 = scalar_lea.sflag [#allocation6], 1
    %648 = vsyncpa %s647, 1

</llo_original>
